<compile_context>
chip_gen: v5e
topology: v5e:2x2
jax: 0.10.0
libtpu: 0.0.40
codegen_flags: <defaults>
</compile_context>

<pallas_src>
import functools

import jax
import jax.numpy as jnp
from jax import lax
from jax.experimental import pallas as pl
from jax.experimental.pallas import tpu as pltpu


def _round_up(x, m):
    return (x + m - 1) // m * m


def _fused_embed_kernel(idx_ref, tab_ref, w_q_ref, a_lin_ref, q_ref, qa_ref,
                        *, dense_rows):
    """Fused gather + q/qa computation for one token tile.

    idx_ref   : (tile, 3) int32  [concept, exercise + concept_vocab_pad, answer]
    tab_ref   : (V, D)  f32  stacked [concept_table ; difficulty*exercise_table]
    w_q_ref   : (D, D)  f32  W[:, :D]^T  (q-half of the Linear)
    a_lin_ref : (2, D)  f32  rows = [b + a_embed[0]@W_a^T,  (a_embed[1]-a_embed[0])@W_a^T]
    """
    vocab = tab_ref.shape[0]

    idx = idx_ref[...]
    con_col = idx[:, 0:1]          # (tile, 1)
    ex_col = idx[:, 1:2]           # (tile, 1), already offset into stacked table
    ans_col = idx[:, 2:3]          # (tile, 1)

    # Two-hot gather: one shared (1, V) lane-iota row feeds both compares; the
    # MXU matmul simultaneously gathers and sums concept + pid*exercise.
    iota = lax.broadcasted_iota(jnp.int32, (1, vocab), 1)
    two_hot = ((iota == con_col) | (iota == ex_col)).astype(jnp.float32)
    q = jnp.dot(two_hot, tab_ref[...], preferred_element_type=jnp.float32)

    # qa = q @ W_q^T + (bias + a_embed[answer] @ W_a^T); the answer/bias half
    # is a precomputed base/delta pair (responses are {0, 1}).
    ans_f = (ans_col > 0).astype(jnp.float32)
    a_sel = a_lin_ref[0:1, :] + ans_f * a_lin_ref[1:2, :]
    qa = jnp.dot(q, w_q_ref[...], preferred_element_type=jnp.float32) + a_sel

    if dense_rows is None:
        q_ref[...] = q
        qa_ref[...] = qa
    else:
        # Lane-dense stores: repack (tile, D) -> (tile*D/128, 128).  Row-major
        # bytes are identical, so the wrapper reshape back is free.
        q_ref[...] = q.reshape(dense_rows, 128)
        qa_ref[...] = qa.reshape(dense_rows, 128)


@functools.partial(jax.jit, static_argnames=("tile_n", "lane_dense"))
def _forward_impl(params, exercise_seq, concept_seq, response_seq, *,
                  tile_n, lane_dense):
    B, S = exercise_seq.shape
    D = params["exercise_embed"].shape[-1]
    N = B * S

    # ---- tile / grid selection -------------------------------------------
    # Multiple of 8 (sublane alignment); for larger N keep tn a multiple of
    # 128 and cap it so the 1-D "parallel" grid has >= 2 steps (v7x megacore).
    tn = max(8, min(tile_n, N))
    tn = _round_up(tn, 8)
    if tn >= 256:
        tn = _round_up(tn, 128)
        half = max(128, _round_up(pl.cdiv(N, 2), 128))
        tn = min(tn, half)
    n_pad = _round_up(N, tn)
    grid = (n_pad // tn,)

    dense_rows = None
    if lane_dense:
        td = tn * D
        # need full 128-lane rows per tile; with >1 grid step the dense block
        # sublane count must also stay a multiple of 8.
        if td % 128 == 0 and (n_pad == tn or td % 1024 == 0):
            dense_rows = td // 128

    # ---- packed per-token index stream (the only per-token HBM input) -----
    con_vp = _round_up(params["concept_embed"].shape[0], 128)
    ex_vp = _round_up(params["exercise_embed"].shape[0], 128)

    ex_flat = exercise_seq.reshape(-1).astype(jnp.int32)
    idx = jnp.stack(
        [concept_seq.reshape(-1).astype(jnp.int32),
         ex_flat + con_vp,                     # pre-offset into stacked table
         response_seq.reshape(-1).astype(jnp.int32)],
        axis=1)                                # (N, 3)
    if n_pad != N:
        idx = jnp.pad(idx, ((0, n_pad - N), (0, 0)))

    # ---- tiny VMEM-resident tables / weights -------------------------------
    con_tab = jnp.pad(params["concept_embed"],
                      ((0, con_vp - params["concept_embed"].shape[0]), (0, 0)))
    ex_scaled = params["exercise_embed"] * params["difficult_param"]   # fold pid
    ex_tab = jnp.pad(ex_scaled, ((0, ex_vp - ex_scaled.shape[0]), (0, 0)))
    big_tab = jnp.concatenate([con_tab, ex_tab], axis=0)               # (V, D)

    w = params["lin_w"]                                                # (D, 2D)
    w_q = w[:, :D].T                                                   # (D, D)
    a_proj = jnp.dot(params["a_embed"], w[:, D:].T,
                     precision=lax.Precision.HIGHEST) + params["lin_b"][None, :]
    a_lin = jnp.stack([a_proj[0], a_proj[1] - a_proj[0]], axis=0)      # (2, D)

    # ---- specs --------------------------------------------------------------
    resident = lambda arr: pl.BlockSpec(arr.shape, lambda i: (0, 0))
    idx_spec = pl.BlockSpec((tn, 3), lambda i: (i, 0))

    if dense_rows is not None:
        out_shape = jax.ShapeDtypeStruct((n_pad * D // 128, 128), jnp.float32)
        out_spec = pl.BlockSpec((dense_rows, 128), lambda i: (i, 0))
    else:
        out_shape = jax.ShapeDtypeStruct((n_pad, D), jnp.float32)
        out_spec = pl.BlockSpec((tn, D), lambda i: (i, 0))

    kernel = functools.partial(_fused_embed_kernel, dense_rows=dense_rows)

    q_flat, qa_flat = pl.pallas_call(
        kernel,
        out_shape=(out_shape, out_shape),
        grid=grid,
        in_specs=[
            idx_spec,            # packed [concept, exercise(offset), answer]
            resident(big_tab),   # stacked concept / scaled-exercise table
            resident(w_q),       # q-half of the Linear (transposed)
            resident(a_lin),     # answer/bias base + delta rows
        ],
        out_specs=(out_spec, out_spec),
        compiler_params=pltpu.CompilerParams(
            dimension_semantics=("parallel",),
            # ~3x headroom over the tn=2048 footprint; within every
            # generation's physical VMEM (v5e/v6e 128 MiB, v7x 64 MiB).
            vmem_limit_bytes=32 * 1024 * 1024),
    )(idx, big_tab, w_q, a_lin)

    q_embed = q_flat.reshape(-1)[:N * D].reshape(B, S, D)
    qa_embed = qa_flat.reshape(-1)[:N * D].reshape(B, S, D)
    # pid output: exact tiny gather in the wrapper (no lane-padded (tile, 1)
    # kernel output stream); its effect on q is folded into the scaled table.
    pid_embed = params["difficult_param"][ex_flat].reshape(B, S, 1)
    return q_embed, qa_embed, pid_embed


# Tri-state cache: None = untested, True/False = lane-dense relayout supported.
_dense_mode_ok = None


def embedding_module_forward(params, exercise_seq, concept_seq, response_seq,
                             *, tile_n=2048):
    """Reproduces EmbeddingModule.forward.

    exercise_seq, concept_seq, response_seq: int32 (B, S)
    Returns (q_embed (B,S,D), qa_embed (B,S,D), pid_embed (B,S,1)).

    tile_n: tokens per grid step.  2048 is safe for all generations with the
    default scoped VMEM (v5e 16 MiB / v6e 32 MiB / v7x 32 MiB).  On v6e it can
    be raised to 4096-8192 (raise vmem_limit_bytes accordingly); on v7x keep
    it at 2048-4096 — VMEM is only 64 MiB and the wrapper already caps the
    tile so the grid keeps >= 2 steps for both TensorCores.
    """
    global _dense_mode_ok
    if _dense_mode_ok is not False:
        try:
            out = _forward_impl(params, exercise_seq, concept_seq, response_seq,
                                tile_n=tile_n, lane_dense=True)
            if _dense_mode_ok is None:
                jax.block_until_ready(out)
                _dense_mode_ok = True
            return out
        except Exception:
            # Mosaic release without the (tile, D) -> (tile*D/128, 128)
            # relayout: fall back to the plain (tile, D) store path.
            _dense_mode_ok = False
    return _forward_impl(params, exercise_seq, concept_seq, response_seq,
                         tile_n=tile_n, lane_dense=False)


def init_params(key, exercise_size, concept_size, embedding_dim):
    """Deterministic synthetic parameters matching the PyTorch module shapes."""
    k1, k2, k3, k4, k5, k6 = jax.random.split(key, 6)
    D = embedding_dim
    return {
        "exercise_embed": jax.random.normal(k1, (exercise_size + 1, D), jnp.float32),
        "concept_embed": jax.random.normal(k2, (concept_size + 1, D), jnp.float32),
        "difficult_param": jax.random.normal(k3, (exercise_size + 1, 1), jnp.float32),
        "a_embed": jax.random.normal(k4, (2, D), jnp.float32),
        # nn.Linear(2D, D): weight (D, 2D), bias (D,)
        "lin_w": jax.random.normal(k5, (D, 2 * D), jnp.float32) * 0.1,
        "lin_b": jax.random.normal(k6, (D,), jnp.float32) * 0.1,
    }


if __name__ == "__main__":
    EXERCISE_SIZE = 50
    CONCEPT_SIZE = 20
    EMBED_DIM = 32
    B, S = 2, 8

    key = jax.random.PRNGKey(0)
    pkey, k_ex, k_con, k_ans = jax.random.split(key, 4)
    params = init_params(pkey, EXERCISE_SIZE, CONCEPT_SIZE, EMBED_DIM)

    exercise_seq = jax.random.randint(k_ex, (B, S), 0, EXERCISE_SIZE + 1, jnp.int32)
    concept_seq = jax.random.randint(k_con, (B, S), 0, CONCEPT_SIZE + 1, jnp.int32)
    response_seq = jax.random.randint(k_ans, (B, S), 0, 2, jnp.int32)

    q, qa, pid = embedding_module_forward(params, exercise_seq, concept_seq,
                                          response_seq)
    jax.block_until_ready((q, qa, pid))

    # pure-JAX reference (HIGHEST precision so f32 semantics match)
    ex_e = params["exercise_embed"][exercise_seq]
    con_e = params["concept_embed"][concept_seq]
    pid_ref = params["difficult_param"][exercise_seq]
    a_e = params["a_embed"][response_seq]
    q_ref = con_e + pid_ref * ex_e
    qa_ref = jnp.dot(jnp.concatenate([q_ref, a_e], -1), params["lin_w"].T,
                     precision=jax.lax.Precision.HIGHEST) + params["lin_b"]

    assert q.shape == (B, S, EMBED_DIM)
    assert qa.shape == (B, S, EMBED_DIM)
    assert pid.shape == (B, S, 1)
    assert jnp.allclose(q, q_ref, atol=1e-4)
    assert jnp.allclose(qa, qa_ref, atol=1e-4)
    assert jnp.allclose(pid, pid_ref, atol=1e-6)

    print("KERNEL_OK")
</pallas_src>

<mosaic_0001>
module attributes {stable_mosaic.version = 11 : i64} {
  func.func @_fused_embed_kernel(%arg0: i32, %arg1: memref<16x3xi32, #tpu.memory_space<vmem>>, %arg2: memref<256x32xf32, #tpu.memory_space<vmem>>, %arg3: memref<32x32xf32, #tpu.memory_space<vmem>>, %arg4: memref<2x32xf32, #tpu.memory_space<vmem>>, %arg5: memref<4x128xf32, #tpu.memory_space<vmem>>, %arg6: memref<4x128xf32, #tpu.memory_space<vmem>>) attributes {dimension_semantics = [#tpu.dimension_semantics<parallel>], iteration_bounds = array<i64: 1>, scalar_prefetch = 0 : i64, scratch_operands = 0 : i64, tpu.core_type = #tpu.core_type<tc>, window_params = [{transform_indices = @transform_0, window_bounds = array<i64: 16, 3>}, {pipeline_mode = #tpu.pipeline_mode<synchronous>, transform_indices = @transform_1, window_bounds = array<i64: 256, 32>}, {pipeline_mode = #tpu.pipeline_mode<synchronous>, transform_indices = @transform_2, window_bounds = array<i64: 32, 32>}, {pipeline_mode = #tpu.pipeline_mode<synchronous>, transform_indices = @transform_3, window_bounds = array<i64: 2, 32>}, {transform_indices = @transform_4, window_bounds = array<i64: 4, 128>}, {transform_indices = @transform_5, window_bounds = array<i64: 4, 128>}]} {
    %c0 = arith.constant 0 : index
    %c0_0 = arith.constant 0 : index
    %0 = vector.load %arg1[%c0, %c0_0] : memref<16x3xi32, #tpu.memory_space<vmem>>, vector<16x3xi32>
    %1 = vector.extract_strided_slice %0 {offsets = [0, 0], sizes = [16, 1], strides = [1, 1]} : vector<16x3xi32> to vector<16x1xi32>
    %2 = vector.extract_strided_slice %0 {offsets = [0, 1], sizes = [16, 1], strides = [1, 1]} : vector<16x3xi32> to vector<16x1xi32>
    %3 = vector.extract_strided_slice %0 {offsets = [0, 2], sizes = [16, 1], strides = [1, 1]} : vector<16x3xi32> to vector<16x1xi32>
    %4 = tpu.iota {dimensions = array<i32: 1>} : vector<1x256xi32>
    %5 = vector.broadcast %4 : vector<1x256xi32> to vector<16x256xi32>
    %6 = vector.broadcast %1 : vector<16x1xi32> to vector<16x256xi32>
    %7 = arith.cmpi eq, %5, %6 : vector<16x256xi32>
    %8 = vector.broadcast %4 : vector<1x256xi32> to vector<16x256xi32>
    %9 = vector.broadcast %2 : vector<16x1xi32> to vector<16x256xi32>
    %10 = arith.cmpi eq, %8, %9 : vector<16x256xi32>
    %11 = arith.ori %7, %10 : vector<16x256xi1>
    %12 = arith.extui %11 : vector<16x256xi1> to vector<16x256xi32>
    %13 = arith.sitofp %12 : vector<16x256xi32> to vector<16x256xf32>
    %c0_1 = arith.constant 0 : index
    %c0_2 = arith.constant 0 : index
    %14 = vector.load %arg2[%c0_1, %c0_2] : memref<256x32xf32, #tpu.memory_space<vmem>>, vector<256x32xf32>
    %cst = arith.constant dense<0.000000e+00> : vector<16x32xf32>
    %15 = tpu.matmul %13, %14, %cst {dimension_numbers = #tpu.dot_dimension_numbers<[1], [0], [0], [1], [0, 0, 1, 1], [], []>} : vector<16x256xf32>, vector<256x32xf32>, vector<16x32xf32> -> vector<16x32xf32>
    %c0_i32 = arith.constant 0 : i32
    %16 = vector.broadcast %c0_i32 : i32 to vector<16x1xi32>
    %17 = arith.cmpi sgt, %3, %16 : vector<16x1xi32>
    %18 = arith.extui %17 : vector<16x1xi1> to vector<16x1xi32>
    %19 = arith.sitofp %18 : vector<16x1xi32> to vector<16x1xf32>
    %c0_3 = arith.constant 0 : index
    %c0_4 = arith.constant 0 : index
    %20 = vector.load %arg4[%c0_3, %c0_4] : memref<2x32xf32, #tpu.memory_space<vmem>>, vector<1x32xf32>
    %c1 = arith.constant 1 : index
    %c0_5 = arith.constant 0 : index
    %21 = vector.load %arg4[%c1, %c0_5] : memref<2x32xf32, #tpu.memory_space<vmem>>, vector<1x32xf32>
    %22 = vector.broadcast %19 : vector<16x1xf32> to vector<16x32xf32>
    %23 = vector.broadcast %21 : vector<1x32xf32> to vector<16x32xf32>
    %24 = arith.mulf %22, %23 : vector<16x32xf32>
    %25 = vector.broadcast %20 : vector<1x32xf32> to vector<16x32xf32>
    %26 = arith.addf %25, %24 : vector<16x32xf32>
    %c0_6 = arith.constant 0 : index
    %c0_7 = arith.constant 0 : index
    %27 = vector.load %arg3[%c0_6, %c0_7] : memref<32x32xf32, #tpu.memory_space<vmem>>, vector<32x32xf32>
    %cst_8 = arith.constant dense<0.000000e+00> : vector<16x32xf32>
    %28 = tpu.matmul %15, %27, %cst_8 {dimension_numbers = #tpu.dot_dimension_numbers<[1], [0], [0], [1], [0, 0, 1, 1], [], []>} : vector<16x32xf32>, vector<32x32xf32>, vector<16x32xf32> -> vector<16x32xf32>
    %29 = arith.addf %28, %26 : vector<16x32xf32>
    %30 = vector.shape_cast %15 : vector<16x32xf32> to vector<4x128xf32>
    %c0_9 = arith.constant 0 : index
    %c0_10 = arith.constant 0 : index
    %31 = vector.load %arg5[%c0_9, %c0_10] : memref<4x128xf32, #tpu.memory_space<vmem>>, vector<4x128xf32>
    tpu.vector_store %arg5[%c0_9, %c0_10], %30 {strides = array<i32>} : memref<4x128xf32, #tpu.memory_space<vmem>>, vector<4x128xf32>,
    %32 = vector.shape_cast %29 : vector<16x32xf32> to vector<4x128xf32>
    %c0_11 = arith.constant 0 : index
    %c0_12 = arith.constant 0 : index
    %33 = vector.load %arg6[%c0_11, %c0_12] : memref<4x128xf32, #tpu.memory_space<vmem>>, vector<4x128xf32>
    tpu.vector_store %arg6[%c0_11, %c0_12], %32 {strides = array<i32>} : memref<4x128xf32, #tpu.memory_space<vmem>>, vector<4x128xf32>,
    return
  }
  func.func @transform_0(%arg0: i32) -> (i32, i32) {
    %c0_i32 = arith.constant 0 : i32
    %c0_i32_0 = arith.constant 0 : i32
    return %arg0, %c0_i32 : i32, i32
  }
  func.func @transform_1(%arg0: i32) -> (i32, i32) {
    %c0_i32 = arith.constant 0 : i32
    %c0_i32_0 = arith.constant 0 : i32
    %c0_i32_1 = arith.constant 0 : i32
    return %c0_i32, %c0_i32_0 : i32, i32
  }
  func.func @transform_2(%arg0: i32) -> (i32, i32) {
    %c0_i32 = arith.constant 0 : i32
    %c0_i32_0 = arith.constant 0 : i32
    %c0_i32_1 = arith.constant 0 : i32
    return %c0_i32, %c0_i32_0 : i32, i32
  }
  func.func @transform_3(%arg0: i32) -> (i32, i32) {
    %c0_i32 = arith.constant 0 : i32
    %c0_i32_0 = arith.constant 0 : i32
    %c0_i32_1 = arith.constant 0 : i32
    return %c0_i32, %c0_i32_0 : i32, i32
  }
  func.func @transform_4(%arg0: i32) -> (i32, i32) {
    %c0_i32 = arith.constant 0 : i32
    %c0_i32_0 = arith.constant 0 : i32
    return %arg0, %c0_i32 : i32, i32
  }
  func.func @transform_5(%arg0: i32) -> (i32, i32) {
    %c0_i32 = arith.constant 0 : i32
    %c0_i32_0 = arith.constant 0 : i32
    return %arg0, %c0_i32 : i32, i32
  }
}

module attributes {stable_mosaic.version = 11 : i64} {
  func.func @_fused_embed_kernel(%arg0: i32, %arg1: memref<16x3xi32, #tpu.memory_space<vmem>>, %arg2: memref<256x32xf32, #tpu.memory_space<vmem>>, %arg3: memref<32x32xf32, #tpu.memory_space<vmem>>, %arg4: memref<2x32xf32, #tpu.memory_space<vmem>>, %arg5: memref<16x32xf32, #tpu.memory_space<vmem>>, %arg6: memref<16x32xf32, #tpu.memory_space<vmem>>) attributes {dimension_semantics = [#tpu.dimension_semantics<parallel>], iteration_bounds = array<i64: 1>, scalar_prefetch = 0 : i64, scratch_operands = 0 : i64, tpu.core_type = #tpu.core_type<tc>, window_params = [{transform_indices = @transform_0, window_bounds = array<i64: 16, 3>}, {pipeline_mode = #tpu.pipeline_mode<synchronous>, transform_indices = @transform_1, window_bounds = array<i64: 256, 32>}, {pipeline_mode = #tpu.pipeline_mode<synchronous>, transform_indices = @transform_2, window_bounds = array<i64: 32, 32>}, {pipeline_mode = #tpu.pipeline_mode<synchronous>, transform_indices = @transform_3, window_bounds = array<i64: 2, 32>}, {transform_indices = @transform_4, window_bounds = array<i64: 16, 32>}, {transform_indices = @transform_5, window_bounds = array<i64: 16, 32>}]} {
    %c0 = arith.constant 0 : index
    %c0_0 = arith.constant 0 : index
    %0 = vector.load %arg1[%c0, %c0_0] : memref<16x3xi32, #tpu.memory_space<vmem>>, vector<16x3xi32>
    %1 = vector.extract_strided_slice %0 {offsets = [0, 0], sizes = [16, 1], strides = [1, 1]} : vector<16x3xi32> to vector<16x1xi32>
    %2 = vector.extract_strided_slice %0 {offsets = [0, 1], sizes = [16, 1], strides = [1, 1]} : vector<16x3xi32> to vector<16x1xi32>
    %3 = vector.extract_strided_slice %0 {offsets = [0, 2], sizes = [16, 1], strides = [1, 1]} : vector<16x3xi32> to vector<16x1xi32>
    %4 = tpu.iota {dimensions = array<i32: 1>} : vector<1x256xi32>
    %5 = vector.broadcast %4 : vector<1x256xi32> to vector<16x256xi32>
    %6 = vector.broadcast %1 : vector<16x1xi32> to vector<16x256xi32>
    %7 = arith.cmpi eq, %5, %6 : vector<16x256xi32>
    %8 = vector.broadcast %4 : vector<1x256xi32> to vector<16x256xi32>
    %9 = vector.broadcast %2 : vector<16x1xi32> to vector<16x256xi32>
    %10 = arith.cmpi eq, %8, %9 : vector<16x256xi32>
    %11 = arith.ori %7, %10 : vector<16x256xi1>
    %12 = arith.extui %11 : vector<16x256xi1> to vector<16x256xi32>
    %13 = arith.sitofp %12 : vector<16x256xi32> to vector<16x256xf32>
    %c0_1 = arith.constant 0 : index
    %c0_2 = arith.constant 0 : index
    %14 = vector.load %arg2[%c0_1, %c0_2] : memref<256x32xf32, #tpu.memory_space<vmem>>, vector<256x32xf32>
    %cst = arith.constant dense<0.000000e+00> : vector<16x32xf32>
    %15 = tpu.matmul %13, %14, %cst {dimension_numbers = #tpu.dot_dimension_numbers<[1], [0], [0], [1], [0, 0, 1, 1], [], []>} : vector<16x256xf32>, vector<256x32xf32>, vector<16x32xf32> -> vector<16x32xf32>
    %c0_i32 = arith.constant 0 : i32
    %16 = vector.broadcast %c0_i32 : i32 to vector<16x1xi32>
    %17 = arith.cmpi sgt, %3, %16 : vector<16x1xi32>
    %18 = arith.extui %17 : vector<16x1xi1> to vector<16x1xi32>
    %19 = arith.sitofp %18 : vector<16x1xi32> to vector<16x1xf32>
    %c0_3 = arith.constant 0 : index
    %c0_4 = arith.constant 0 : index
    %20 = vector.load %arg4[%c0_3, %c0_4] : memref<2x32xf32, #tpu.memory_space<vmem>>, vector<1x32xf32>
    %c1 = arith.constant 1 : index
    %c0_5 = arith.constant 0 : index
    %21 = vector.load %arg4[%c1, %c0_5] : memref<2x32xf32, #tpu.memory_space<vmem>>, vector<1x32xf32>
    %22 = vector.broadcast %19 : vector<16x1xf32> to vector<16x32xf32>
    %23 = vector.broadcast %21 : vector<1x32xf32> to vector<16x32xf32>
    %24 = arith.mulf %22, %23 : vector<16x32xf32>
    %25 = vector.broadcast %20 : vector<1x32xf32> to vector<16x32xf32>
    %26 = arith.addf %25, %24 : vector<16x32xf32>
    %c0_6 = arith.constant 0 : index
    %c0_7 = arith.constant 0 : index
    %27 = vector.load %arg3[%c0_6, %c0_7] : memref<32x32xf32, #tpu.memory_space<vmem>>, vector<32x32xf32>
    %cst_8 = arith.constant dense<0.000000e+00> : vector<16x32xf32>
    %28 = tpu.matmul %15, %27, %cst_8 {dimension_numbers = #tpu.dot_dimension_numbers<[1], [0], [0], [1], [0, 0, 1, 1], [], []>} : vector<16x32xf32>, vector<32x32xf32>, vector<16x32xf32> -> vector<16x32xf32>
    %29 = arith.addf %28, %26 : vector<16x32xf32>
    %c0_9 = arith.constant 0 : index
    %c0_10 = arith.constant 0 : index
    %30 = vector.load %arg5[%c0_9, %c0_10] : memref<16x32xf32, #tpu.memory_space<vmem>>, vector<16x32xf32>
    tpu.vector_store %arg5[%c0_9, %c0_10], %15 {strides = array<i32>} : memref<16x32xf32, #tpu.memory_space<vmem>>, vector<16x32xf32>,
    %c0_11 = arith.constant 0 : index
    %c0_12 = arith.constant 0 : index
    %31 = vector.load %arg6[%c0_11, %c0_12] : memref<16x32xf32, #tpu.memory_space<vmem>>, vector<16x32xf32>
    tpu.vector_store %arg6[%c0_11, %c0_12], %29 {strides = array<i32>} : memref<16x32xf32, #tpu.memory_space<vmem>>, vector<16x32xf32>,
    return
  }
  func.func @transform_0(%arg0: i32) -> (i32, i32) {
    %c0_i32 = arith.constant 0 : i32
    %c0_i32_0 = arith.constant 0 : i32
    return %arg0, %c0_i32 : i32, i32
  }
  func.func @transform_1(%arg0: i32) -> (i32, i32) {
    %c0_i32 = arith.constant 0 : i32
    %c0_i32_0 = arith.constant 0 : i32
    %c0_i32_1 = arith.constant 0 : i32
    return %c0_i32, %c0_i32_0 : i32, i32
  }
  func.func @transform_2(%arg0: i32) -> (i32, i32) {
    %c0_i32 = arith.constant 0 : i32
    %c0_i32_0 = arith.constant 0 : i32
    %c0_i32_1 = arith.constant 0 : i32
    return %c0_i32, %c0_i32_0 : i32, i32
  }
  func.func @transform_3(%arg0: i32) -> (i32, i32) {
    %c0_i32 = arith.constant 0 : i32
    %c0_i32_0 = arith.constant 0 : i32
    %c0_i32_1 = arith.constant 0 : i32
    return %c0_i32, %c0_i32_0 : i32, i32
  }
  func.func @transform_4(%arg0: i32) -> (i32, i32) {
    %c0_i32 = arith.constant 0 : i32
    %c0_i32_0 = arith.constant 0 : i32
    return %arg0, %c0_i32 : i32, i32
  }
  func.func @transform_5(%arg0: i32) -> (i32, i32) {
    %c0_i32 = arith.constant 0 : i32
    %c0_i32_0 = arith.constant 0 : i32
    return %arg0, %c0_i32 : i32, i32
  }
}

</mosaic_0001>

<llo_original>
// kernel: _forward_impl.1
$region0: #{_forward_impl.1}
  #allocation0 [shape = 'u32[]', space=smem, size = 0x4, offset = 0x4, fixed_abs, tag = 'smem constant byte address 0x4 - core index']
  #allocation1 [shape = 'u32[72,128]{1,0:T(1,128)}', space=vmem, size = 0x9000, scoped, tag = 'internal scratch']
  %s0 = inlined_call_operand.vmem [shape: s32[16,3], index: 0, kind: input, shape index: {}]
  %s1 = inlined_call_operand.vmem [shape: f32[256,32], index: 1, kind: input, shape index: {}]
  %s2 = inlined_call_operand.vmem [shape: f32[32,32], index: 2, kind: input, shape index: {}]
  %s3 = inlined_call_operand.vmem [shape: f32[2,32], index: 3, kind: input, shape index: {}]
  %s4 = inlined_call_operand.hbm [shape: f32[16,32], index: 4, kind: output, shape index: {0}]
  %s5 = inlined_call_operand.hbm [shape: f32[16,32], index: 5, kind: output, shape index: {1}]
  %6 = xla_tuple %s4, %s5
  %s7 = sld [smem:[#allocation0]]
  $region34: #{_forward_impl.1} parent=0
    _
  %s9 = ssub.s32 1, %s7
  %s10 = scalar_select 0, %s9, %s7
  $region1: #{_forward_impl.1} parent=0
    #allocation2 [shape = 'u8[8192]{0}', space=vmem, size = 0x2000, scoped, tag = 'output window, operand 0, single buffered']
    #allocation3 [shape = 's32[1]{0}', space=sflag, size = 0x4, scoped, tag = 'scoped memory for _forward_impl.1']
    #allocation4 [shape = 'u8[8192]{0}', space=vmem, size = 0x2000, scoped, tag = 'output window, operand 1, single buffered']
    #allocation5 [shape = 's32[1]{0}', space=sflag, size = 0x4, scoped, tag = 'scoped memory for _forward_impl.1']
    %11 = vsyncpa [#allocation3], 0
    %12 = vsyncpa [#allocation5], 0
    // Predicated region
    $region2: #{_forward_impl.1} parent=1 // pred_check
      _
    $region3: #{_forward_impl.1} parent=1 // pred_check_branch
      %14 = sbr.rel (0) target = $region5
    $region4: #{_forward_impl.1} parent=1 // pred_region
      _
    $region5: #{_forward_impl.1} parent=1 // pred_fallthru
      _
    // Predicated region
    $region6: #{_forward_impl.1} parent=1 // pred_check
      _
    $region7: #{_forward_impl.1} parent=1 // pred_check_branch
      %16 = sbr.rel (0) target = $region9
    $region8: #{_forward_impl.1} parent=1 // pred_region
      _
    $region9: #{_forward_impl.1} parent=1 // pred_fallthru
      _
    // Predicated region
    $region10: #{_forward_impl.1} parent=1 // pred_check
      _
    $region11: #{_forward_impl.1} parent=1 // pred_check_branch
      %18 = sbr.rel (0) target = $region13
    $region12: #{_forward_impl.1} parent=1 // pred_region
      _
    $region13: #{_forward_impl.1} parent=1 // pred_fallthru
      _
    // Predicated region
    $region14: #{_forward_impl.1} parent=1 // pred_check
      _
    $region15: #{_forward_impl.1} parent=1 // pred_check_branch
      %20 = sbr.rel (0) target = $region17
    $region16: #{_forward_impl.1} parent=1 // pred_region
      _
    $region17: #{_forward_impl.1} parent=1 // pred_fallthru
      _
    %v21 = vld [vmem:[%s0] sm:$0xff]
    %v22 = vld [vmem:[%s0 + $0x8] sm:$0xff]
    %v23 = vlaneseq
    %v24 = vand.u32 %v23, 127
    %v25 = vadd.s32 %v24, 128
    %26 = vset.pattern.permute.xlu0 0
    %27 = vperm.xlu0 %26, %v21
    %v28 = vpop.permute.xlu0 %27
    %29 = vset.pattern.permute.xlu0 0
    %30 = vperm.xlu0 %29, %v22
    %v31 = vpop.permute.xlu0 %30
    %vm32 = vcmp.eq.s32.totalorder %v24, %v28
    %vm33 = vcmp.eq.s32.totalorder %v25, %v28
    %vm34 = vcmp.eq.s32.totalorder %v24, %v31
    %vm35 = vcmp.eq.s32.totalorder %v25, %v31
    %36 = vset.pattern.permute.xlu0 1
    %37 = vperm.xlu0 %36, %v21
    %v38 = vpop.permute.xlu0 %37
    %39 = vset.pattern.permute.xlu0 1
    %40 = vperm.xlu0 %39, %v22
    %v41 = vpop.permute.xlu0 %40
    %vm42 = vcmp.eq.s32.totalorder %v24, %v38
    %vm43 = vcmp.eq.s32.totalorder %v25, %v38
    %vm44 = vcmp.eq.s32.totalorder %v24, %v41
    %vm45 = vcmp.eq.s32.totalorder %v25, %v41
    %vm46 = vmor %vm32, %vm42
    %vm47 = vmor %vm33, %vm43
    %vm48 = vmor %vm34, %vm44
    %vm49 = vmor %vm35, %vm45
    %v50 = vsel %vm46, 1, 0
    %v51 = vsel %vm47, 1, 0
    %v52 = vsel %vm48, 1, 0
    %v53 = vsel %vm49, 1, 0
    %v54 = vcvt.s32.f32 %v50
    %v55 = vcvt.s32.f32 %v51
    %v56 = vcvt.s32.f32 %v52
    %v57 = vcvt.s32.f32 %v53
    %v58 = vld [vmem:[%s1] sm:$0xff]
    %v59 = vld [vmem:[%s1 + $0x8] sm:$0xff]
    %v60 = vld [vmem:[%s1 + $0x10] sm:$0xff]
    %v61 = vld [vmem:[%s1 + $0x18] sm:$0xff]
    %v62 = vld [vmem:[%s1 + $0x20] sm:$0xff]
    %v63 = vld [vmem:[%s1 + $0x28] sm:$0xff]
    %v64 = vld [vmem:[%s1 + $0x30] sm:$0xff]
    %v65 = vld [vmem:[%s1 + $0x38] sm:$0xff]
    %v66 = vld [vmem:[%s1 + $0x40] sm:$0xff]
    %v67 = vld [vmem:[%s1 + $0x48] sm:$0xff]
    %v68 = vld [vmem:[%s1 + $0x50] sm:$0xff]
    %v69 = vld [vmem:[%s1 + $0x58] sm:$0xff]
    %v70 = vld [vmem:[%s1 + $0x60] sm:$0xff]
    %v71 = vld [vmem:[%s1 + $0x68] sm:$0xff]
    %v72 = vld [vmem:[%s1 + $0x70] sm:$0xff]
    %v73 = vld [vmem:[%s1 + $0x78] sm:$0xff]
    %v74 = vld [vmem:[%s1 + $0x80] sm:$0xff]
    %v75 = vld [vmem:[%s1 + $0x88] sm:$0xff]
    %v76 = vld [vmem:[%s1 + $0x90] sm:$0xff]
    %v77 = vld [vmem:[%s1 + $0x98] sm:$0xff]
    %v78 = vld [vmem:[%s1 + $0xa0] sm:$0xff]
    %v79 = vld [vmem:[%s1 + $0xa8] sm:$0xff]
    %v80 = vld [vmem:[%s1 + $0xb0] sm:$0xff]
    %v81 = vld [vmem:[%s1 + $0xb8] sm:$0xff]
    %v82 = vld [vmem:[%s1 + $0xc0] sm:$0xff]
    %v83 = vld [vmem:[%s1 + $0xc8] sm:$0xff]
    %v84 = vld [vmem:[%s1 + $0xd0] sm:$0xff]
    %v85 = vld [vmem:[%s1 + $0xd8] sm:$0xff]
    %v86 = vld [vmem:[%s1 + $0xe0] sm:$0xff]
    %v87 = vld [vmem:[%s1 + $0xe8] sm:$0xff]
    %v88 = vld [vmem:[%s1 + $0xf0] sm:$0xff]
    %v89 = vld [vmem:[%s1 + $0xf8] sm:$0xff]
    %90 = vmatpush.msra.mxu0 %v73
    %91 = vmatpush.msra.mxu0 %v72
    %92 = vmatpush.msra.mxu0 %v71
    %93 = vmatpush.msra.mxu0 %v70
    %94 = vmatpush.msra.mxu0 %v69
    %95 = vmatpush.msra.mxu0 %v68
    %96 = vmatpush.msra.mxu0 %v67
    %97 = vmatpush.msra.mxu0 %v66
    %98 = vmatpush.msra.mxu0 %v65
    %99 = vmatpush.msra.mxu0 %v64
    %100 = vmatpush.msra.mxu0 %v63
    %101 = vmatpush.msra.mxu0 %v62
    %102 = vmatpush.msra.mxu0 %v61
    %103 = vmatpush.msra.mxu0 %v60
    %104 = vmatpush.msra.mxu0 %v59
    %105 = vmatpush.msra.mxu0 %v58
    %106 = vmatmul.f32.gmra.mxu0 %v54
    %v107 = vpop.f32.mrf.mxu0
    %v108 = vadd.f32 0.0, %v107
    %109 = vmatmul.f32.gmra.mxu0 %v56
    %v110 = vpop.f32.mrf.mxu0
    %v111 = vadd.f32 0.0, %v110
    %112 = vdwg.mxu0
    %113 = vmatpush.msra.mxu0 %v89
    %114 = vmatpush.msra.mxu0 %v88
    %115 = vmatpush.msra.mxu0 %v87
    %116 = vmatpush.msra.mxu0 %v86
    %117 = vmatpush.msra.mxu0 %v85
    %118 = vmatpush.msra.mxu0 %v84
    %119 = vmatpush.msra.mxu0 %v83
    %120 = vmatpush.msra.mxu0 %v82
    %121 = vmatpush.msra.mxu0 %v81
    %122 = vmatpush.msra.mxu0 %v80
    %123 = vmatpush.msra.mxu0 %v79
    %124 = vmatpush.msra.mxu0 %v78
    %125 = vmatpush.msra.mxu0 %v77
    %126 = vmatpush.msra.mxu0 %v76
    %127 = vmatpush.msra.mxu0 %v75
    %128 = vmatpush.msra.mxu0 %v74
    %129 = vmatmul.f32.gmra.mxu0 %v55
    %v130 = vpop.f32.mrf.mxu0
    %v131 = vadd.f32 %v108, %v130
    %132 = vmatmul.f32.gmra.mxu0 %v57
    %v133 = vpop.f32.mrf.mxu0
    %v134 = vadd.f32 %v111, %v133
    %135 = vdwg.mxu0
    %vm136 = vcmp.gt.s32.totalorder %v21, 0
    %vm137 = vcmp.gt.s32.totalorder %v22, 0
    %v138 = vsel %vm136, 1, 0
    %v139 = vsel %vm137, 1, 0
    %v140 = vcvt.s32.f32 %v138
    %v141 = vcvt.s32.f32 %v139
    %v142 = vld [vmem:[%s3] sm:$0x1]
    %v143 = vld [vmem:[%s3 + $0x1] sm:$0x1]
    %145 = vset.pattern.permute.xlu0 2
    %146 = vperm.xlu0 %145, %v140
    %v147 = vpop.permute.xlu0 %146
    %150 = vset.pattern.permute.xlu0 2
    %151 = vperm.xlu0 %150, %v141
    %v152 = vpop.permute.xlu0 %151
    %v154 = vperm.slane %v143, 0
    %v155 = vmul.f32 %v147, %v154
    %v156 = vmul.f32 %v152, %v154
    %v157 = vperm.slane %v142, 0
    %v158 = vadd.f32 %v157, %v155
    %v159 = vadd.f32 %v157, %v156
    %v160 = vld [vmem:[%s2] sm:$0xff]
    %v161 = vld [vmem:[%s2 + $0x8] sm:$0xff]
    %v162 = vld [vmem:[%s2 + $0x10] sm:$0xff]
    %v163 = vld [vmem:[%s2 + $0x18] sm:$0xff]
    %vm164 = vcmask 261120
    %v166 = vsel %vm164, %v131, 0
    %v169 = vsel %vm164, %v134, 0
    %171 = vmatpush.msra.mxu0 0.0
    %172 = vmatpush.msra.mxu0 0.0
    %173 = vmatpush.msra.mxu0 0.0
    %174 = vmatpush.msra.mxu0 0.0
    %175 = vmatpush.msra.mxu0 0.0
    %176 = vmatpush.msra.mxu0 0.0
    %177 = vmatpush.msra.mxu0 0.0
    %178 = vmatpush.msra.mxu0 0.0
    %179 = vmatpush.msra.mxu0 0.0
    %180 = vmatpush.msra.mxu0 0.0
    %181 = vmatpush.msra.mxu0 0.0
    %182 = vmatpush.msra.mxu0 0.0
    %183 = vmatpush.msra.mxu0 %v163
    %184 = vmatpush.msra.mxu0 %v162
    %185 = vmatpush.msra.mxu0 %v161
    %186 = vmatpush.msra.mxu0 %v160
    %187 = vmatmul.f32.gmra.mxu0 %v166
    %v188 = vpop.f32.mrf.mxu0
    %v189 = vadd.f32 %v158, %v188
    %190 = vmatmul.f32.gmra.mxu0 %v169
    %v191 = vpop.f32.mrf.mxu0
    %v192 = vadd.f32 %v159, %v191
    %193 = vdwg.mxu0
    %194 = vst.msk [vmem:[#allocation2] sm:$0xff] %vm164, %v131
    %195 = vst.msk [vmem:[#allocation2 + $0x8] sm:$0xff] %vm164, %v134
    %196 = vst.msk [vmem:[#allocation4] sm:$0xff] %vm164, %v189
    %197 = vst.msk [vmem:[#allocation4 + $0x8] sm:$0xff] %vm164, %v192
    // Predicated region
    $region18: #{_forward_impl.1} parent=1 // pred_check
      _
    $region19: #{_forward_impl.1} parent=1 // pred_check_branch
      %199 = sbr.rel (0) target = $region21
    $region20: #{_forward_impl.1} parent=1 // pred_region
      %201 = vsyncadd [#allocation3], 0
      %s202 = sshll.u32 [#allocation2], 4
      %s203 = int_to_ptr.vmem [resolvable:$true] %s202
      %s204 = sshll.u32 %s4, 4
      %s205 = int_to_ptr.hbm [resolvable:$true] %s204
      %210 = dma.vmem_to_hbm [thread:$0]  %s203, 256, %s205, [#allocation3], 128, 128, 8
    $region21: #{_forward_impl.1} parent=1 // pred_fallthru
      _
    // Predicated region
    $region22: #{_forward_impl.1} parent=1 // pred_check
      _
    $region23: #{_forward_impl.1} parent=1 // pred_check_branch
      %212 = sbr.rel (0) target = $region25
    $region24: #{_forward_impl.1} parent=1 // pred_region
      %214 = vsyncadd [#allocation5], 0
      %s215 = sshll.u32 [#allocation4], 4
      %s216 = int_to_ptr.vmem [resolvable:$true] %s215
      %s217 = sshll.u32 %s5, 4
      %s218 = int_to_ptr.hbm [resolvable:$true] %s217
      %223 = dma.vmem_to_hbm [thread:$0]  %s216, 256, %s218, [#allocation5], 128, 128, 8
    $region25: #{_forward_impl.1} parent=1 // pred_fallthru
      _
    // Predicated region
    $region26: #{_forward_impl.1} parent=1 // pred_check
      _
    $region27: #{_forward_impl.1} parent=1 // pred_check_branch
      %225 = sbr.rel (0) target = $region29
    $region28: #{_forward_impl.1} parent=1 // pred_region
      %227 = dma.done [#allocation3], 256
    $region29: #{_forward_impl.1} parent=1 // pred_fallthru
      _
    // Predicated region
    $region30: #{_forward_impl.1} parent=1 // pred_check
      _
    $region31: #{_forward_impl.1} parent=1 // pred_check_branch
      %229 = sbr.rel (0) target = $region33
    $region32: #{_forward_impl.1} parent=1 // pred_region
      %231 = dma.done [#allocation5], 256
    $region33: #{_forward_impl.1} parent=1 // pred_fallthru
      _
    %232 = vsyncpa [#allocation3], 1
    %233 = vsyncpa [#allocation5], 1

</llo_original>
